<compile_context>
chip_gen: v7x
topology: tpu7x:2x2x1
jax: 0.10.0
libtpu: 0.0.40
codegen_flags: <defaults>
</compile_context>

<pallas_src>
import functools

import jax
import jax.numpy as jnp
from jax import lax
from jax.experimental import pallas as pl
from jax.experimental.pallas import tpu as pltpu


def _round_up(x, m):
    return (x + m - 1) // m * m


def _vmem_limit_bytes():
    """Per-generation scoped-VMEM request (v7x has only 64 MiB per core)."""
    cap = 64 * 1024 * 1024
    try:
        cap = int(getattr(pltpu.get_tpu_info(), "vmem_capacity_bytes", cap))
    except Exception:
        pass
    return min(int(cap * 0.55), 64 * 1024 * 1024)


def _block_diag(mats):
    """(G, a, b) -> (G*a, G*b) block-diagonal matrix (wrapper-side, one time)."""
    g, a, b = mats.shape
    eye = jnp.eye(g, dtype=mats.dtype)
    return (eye[:, None, :, None] * mats[:, :, None, :]).reshape(g * a, g * b)


# ---------------------------------------------------------------------------
# Pass 1: per-(batch, tile) GroupNorm partial statistics via the Gram trick.
# Grid = (B, num_time_tiles), both axes parallel. Zero time-padding contributes
# exactly zero to both partial sums.
# ---------------------------------------------------------------------------
def _gn_stats_kernel(x_ref, wtw_ref, wcol_ref, stat_ref,
                     *, groups, stat_pad, conv_dtype):
    sums, ssqs = [], []
    for g in range(groups):
        xg = x_ref[0, g]                                          # (cd, TT)
        xc = xg.astype(conv_dtype)
        # sum(z^2) = sum((W^T W) * (x x^T)); contraction dim = TT fills the MXU
        # even when cd < 128 and never materializes z.
        gram = lax.dot_general(xc, xc, (((1,), (1,)), ((), ())),
                               preferred_element_type=jnp.float32)  # (cd, cd)
        ssqs.append(jnp.sum(wtw_ref[g] * gram))
        # sum(z) = sum_i colsum(W)_i * sum_t x_it
        sums.append(jnp.sum(wcol_ref[g] * xg))
    vals = jnp.stack(sums + ssqs)                                 # (2*groups,)
    row = jnp.concatenate(
        [vals, jnp.zeros((stat_pad - 2 * groups,), jnp.float32)])
    stat_ref[0, 0] = row.reshape(1, stat_pad)                     # lane-dense


# ---------------------------------------------------------------------------
# Pass 2: conv -> folded GroupNorm FMA -> scores -> per-group argmin ->
# one-hot gather (zq), plus masked codeword counts / squared-error partials
# packed into one lane-dense side slab per grid step.
# ---------------------------------------------------------------------------
def _vq_kernel(x_ref, w_ref, emb_ref, e2_ref, scale_ref, shift_ref,
               zq_ref, idx_ref, side_ref,
               *, kgroups, subgroups, num_vars, t_tile, t_real, side_pad,
               conv_dtype, score_dtype, gather_dtype):
    t = pl.program_id(1)
    col = lax.broadcasted_iota(jnp.int32, (1, t_tile), 1) + t * t_tile
    mask = (col < t_real).astype(jnp.float32)                     # valid time

    vidx = lax.broadcasted_iota(jnp.int32, (num_vars, t_tile), 0)

    cnt_parts = []
    sse = jnp.zeros((), jnp.float32)
    # TODO(synk): switch this static unroll to lax.fori_loop + VMEM scratch for
    # kgroups > 4 to bound live ranges (kgroups == 1 whenever var_dim < 128).
    for g in range(kgroups):
        xg = x_ref[0, g]                                          # (CDk, TT)
        wg = w_ref[g]                                             # (CDk, CDk)
        zg = jnp.dot(wg.astype(conv_dtype), xg.astype(conv_dtype),
                     preferred_element_type=jnp.float32)          # (CDk, TT)
        # Fp32GroupNorm folded into a per-channel FMA (scale/shift from pass 1).
        zgn = zg * scale_ref[0, g] + shift_ref[0, g]

        eg = emb_ref[g]                                           # (Vk, CDk)
        cross = jnp.dot(eg.astype(score_dtype), zgn.astype(score_dtype),
                        preferred_element_type=jnp.float32)       # (Vk, TT)
        # ||e - z||^2 = e2 + z2 - 2 e.z ; z2 is constant per time column.
        score = e2_ref[g] - 2.0 * cross

        oh_parts = []
        for s in range(subgroups):
            sc = score[s * num_vars:(s + 1) * num_vars]           # (V, TT)
            smin = jnp.min(sc, axis=0, keepdims=True)
            idx_s = jnp.min(jnp.where(sc <= smin, vidx, num_vars), axis=0)
            idx_ref[0, g * subgroups + s] = idx_s.astype(jnp.int32)
            oh_parts.append((vidx == idx_s[None, :]).astype(jnp.float32))
        onehot = oh_parts[0] if subgroups == 1 else jnp.concatenate(oh_parts, 0)

        # Codeword gather as a one-hot matmul; f32 by default so zq is exact
        # given the selected index.
        zq_g = lax.dot_general(eg.astype(gather_dtype),
                               onehot.astype(gather_dtype),
                               (((0,), (0,)), ((), ())),
                               preferred_element_type=jnp.float32)  # (CDk, TT)
        # NOTE: padded time columns hold garbage; the wrapper slices them off.
        zq_ref[0, g] = zq_g.astype(zq_ref.dtype)

        cnt_parts.append(jnp.sum(onehot * mask, axis=1))          # (Vk,)
        sse = sse + jnp.sum(((zq_g - zgn) ** 2) * mask)

    cnt = cnt_parts[0] if kgroups == 1 else jnp.concatenate(cnt_parts)
    pad = side_pad - cnt.shape[0] - 1
    row = jnp.concatenate([cnt, sse.reshape(1), jnp.zeros((pad,), jnp.float32)])
    side_ref[0, 0] = row.reshape(1, side_pad)                     # lane-dense


# ---------------------------------------------------------------------------
# Wrapper: layout, padding, stats folding, scalar epilogue.
# ---------------------------------------------------------------------------
def kmeans_vq_forward(x, params, *, groups, num_vars, combine_groups,
                      time_first, gamma=0.25, produce_targets=True,
                      gn_eps=1e-5, t_tile=512,
                      conv_dtype=jnp.bfloat16, score_dtype=jnp.bfloat16,
                      gather_dtype=jnp.float32, fuse_groups=None):
    if time_first:
        x = jnp.transpose(x, (0, 2, 1))                           # (B, dim, T)
    x = x.astype(jnp.float32)
    B, dim, T = x.shape
    assert dim % groups == 0
    cd = dim // groups
    V = num_vars

    emb = params["embedding"].astype(jnp.float32)                 # (V, ng, cd)
    if combine_groups:
        emb = jnp.broadcast_to(emb, (V, groups, cd))
    emb_g = jnp.transpose(emb, (1, 0, 2))                         # (g, V, cd)
    e2 = jnp.sum(emb_g * emb_g, axis=-1, keepdims=True)           # (g, V, 1)

    conv_w = params["conv_weight"].astype(jnp.float32).reshape(groups, cd, cd)
    gn_w = params["gn_weight"].astype(jnp.float32).reshape(groups, cd)
    gn_b = params["gn_bias"].astype(jnp.float32).reshape(groups, cd)

    # Fuse per-group matmuls into block-diagonal ones when var_dim underfills
    # the MXU contraction dimension.
    if fuse_groups is None:
        fuse_groups = groups > 1 and cd < 128 and cd % 8 == 0
    if fuse_groups:
        kgroups, subgroups, cdk = 1, groups, dim
        w_k = _block_diag(conv_w)[None]                           # (1, dim, dim)
        emb_k = _block_diag(emb_g)[None]                          # (1, g*V, dim)
        e2_k = e2.reshape(1, groups * V, 1)
    else:
        kgroups, subgroups, cdk = groups, 1, cd
        w_k, emb_k, e2_k = conv_w, emb_g, e2
    vk = subgroups * V

    # Pass-1 parameters for the Gram trick.
    wtw = jnp.einsum("goi,goj->gij", conv_w, conv_w)              # (g, cd, cd)
    wcol = jnp.sum(conv_w, axis=1).reshape(groups, cd, 1)         # column sums

    # Lane-aligned time tiling (multiple of 128; 512 default for real shapes).
    min_pad = _round_up(T, 128)
    TT = min_pad if min_pad <= t_tile else _round_up(t_tile, 128)
    T_pad = _round_up(T, TT)
    nt = T_pad // TT

    xg = x.reshape(B, groups, cd, T)                              # group-major
    if T_pad != T:
        xg = jnp.pad(xg, ((0, 0), (0, 0), (0, 0), (0, T_pad - T)))
    xk = xg.reshape(B, kgroups, cdk, T_pad)                       # fused view

    stat_pad = _round_up(2 * groups, 128)
    side_pad = _round_up(groups * V + 1, 128)

    cparams = pltpu.CompilerParams(
        dimension_semantics=("parallel", "parallel"),
        vmem_limit_bytes=_vmem_limit_bytes())

    def run_passes(single_buffer):
        def pspec(shape, index_map):
            # Grid-invariant parameter blocks: no need to double-buffer them.
            if single_buffer:
                return pl.BlockSpec(shape, index_map,
                                    pipeline_mode=pl.Buffered(1))
            return pl.BlockSpec(shape, index_map)

        # ---- pass 1: GroupNorm statistics (per-tile partials) --------------
        stats = pl.pallas_call(
            functools.partial(_gn_stats_kernel, groups=groups,
                              stat_pad=stat_pad, conv_dtype=conv_dtype),
            out_shape=jax.ShapeDtypeStruct((B, nt, 1, stat_pad), jnp.float32),
            grid=(B, nt),
            in_specs=[
                pl.BlockSpec((1, groups, cd, TT), lambda b, t: (b, 0, 0, t)),
                pspec((groups, cd, cd), lambda b, t: (0, 0, 0)),
                pspec((groups, cd, 1), lambda b, t: (0, 0, 0)),
            ],
            out_specs=pl.BlockSpec((1, 1, 1, stat_pad),
                                   lambda b, t: (b, t, 0, 0)),
            compiler_params=cparams,
        )(xg, wtw, wcol)

        st = jnp.sum(stats, axis=(1, 2))                          # (B, stat_pad)
        n_el = float(cd * T)                                      # real elems
        mean = st[:, :groups] / n_el                              # (B, groups)
        # TODO(synk): E[z^2]-mean^2 can cancel for very long T; switch to a
        # per-tile-pivot accumulation if that regime matters.
        var = jnp.maximum(st[:, groups:2 * groups] / n_el - mean * mean, 0.0)
        inv = lax.rsqrt(var + gn_eps)
        scale = gn_w[None] * inv[..., None]                       # (B, g, cd)
        shift = gn_b[None] - mean[..., None] * scale
        scale = scale.reshape(B, kgroups, cdk, 1)
        shift = shift.reshape(B, kgroups, cdk, 1)

        # ---- pass 2: conv -> GroupNorm FMA -> argmin -> one-hot gather -----
        kernel = functools.partial(
            _vq_kernel, kgroups=kgroups, subgroups=subgroups, num_vars=V,
            t_tile=TT, t_real=T, side_pad=side_pad,
            conv_dtype=conv_dtype, score_dtype=score_dtype,
            gather_dtype=gather_dtype)
        out_shapes = (
            jax.ShapeDtypeStruct((B, kgroups, cdk, T_pad), jnp.float32),  # zq
            jax.ShapeDtypeStruct((B, groups, T_pad), jnp.int32),          # idx
            jax.ShapeDtypeStruct((B, nt, 1, side_pad), jnp.float32),      # side
        )
        return pl.pallas_call(
            kernel,
            out_shape=out_shapes,
            grid=(B, nt),
            in_specs=[
                pl.BlockSpec((1, kgroups, cdk, TT), lambda b, t: (b, 0, 0, t)),
                pspec((kgroups, cdk, cdk), lambda b, t: (0, 0, 0)),
                pspec((kgroups, vk, cdk), lambda b, t: (0, 0, 0)),
                pspec((kgroups, vk, 1), lambda b, t: (0, 0, 0)),
                pl.BlockSpec((1, kgroups, cdk, 1), lambda b, t: (b, 0, 0, 0)),
                pl.BlockSpec((1, kgroups, cdk, 1), lambda b, t: (b, 0, 0, 0)),
            ],
            out_specs=(
                pl.BlockSpec((1, kgroups, cdk, TT), lambda b, t: (b, 0, 0, t)),
                pl.BlockSpec((1, groups, TT), lambda b, t: (b, 0, t)),
                pl.BlockSpec((1, 1, 1, side_pad), lambda b, t: (b, t, 0, 0)),
            ),
            compiler_params=cparams,
        )(xk, w_k, emb_k, e2_k, scale, shift)

    try:
        zq, idx, side = run_passes(single_buffer=True)
    except Exception:
        # pl.Buffered(1) unsupported on this jax version -> default buffering.
        zq, idx, side = run_passes(single_buffer=False)

    # ---- scalar epilogue ----------------------------------------------------
    tot = jnp.sum(side, axis=(0, 1, 2))                           # (side_pad,)
    hard_probs = tot[:groups * V].reshape(groups, V) / float(B * T)
    code_perplexity = jnp.sum(
        jnp.exp(-jnp.sum(hard_probs * jnp.log(hard_probs + 1e-7), axis=-1)))

    mse = tot[groups * V] / float(B * dim * T)                    # mean((zq-ze)^2)
    kmeans_loss = mse + gamma * mse                               # latent + gamma*commit

    # Padded time columns of zq/idx hold garbage; slice them off here.
    x_out = zq.reshape(B, dim, T_pad)[:, :, :T]
    if time_first:
        x_out = jnp.transpose(x_out, (0, 2, 1))                   # (B, T, C)

    result = {"num_vars": V, "x": x_out,
              "code_perplexity": code_perplexity,
              "kmeans_loss": kmeans_loss}
    if produce_targets:
        result["targets"] = jnp.transpose(idx[:, :, :T], (0, 2, 1))  # (B, T, g)
    return result


# ---------------------------------------------------------------------------
# Pure-JAX reference (mirrors the PyTorch forward) for the correctness check.
# ---------------------------------------------------------------------------
def reference_forward(x, params, *, groups, num_vars, combine_groups,
                      time_first, gamma=0.25, gn_eps=1e-5):
    if time_first:
        x = jnp.transpose(x, (0, 2, 1))
    x = x.astype(jnp.float32)
    B, dim, T = x.shape
    cd = dim // groups
    V = num_vars

    emb = params["embedding"].astype(jnp.float32)
    if combine_groups:
        emb = jnp.broadcast_to(emb, (V, groups, cd))
    W = params["conv_weight"].astype(jnp.float32).reshape(groups, cd, cd)

    xg = x.reshape(B, groups, cd, T)
    ze = jnp.einsum("goi,bgit->bgot", W, xg)                      # grouped conv
    mean = jnp.mean(ze, axis=(2, 3), keepdims=True)
    var = jnp.mean((ze - mean) ** 2, axis=(2, 3), keepdims=True)
    zen = (ze - mean) / jnp.sqrt(var + gn_eps)
    zen = (zen * params["gn_weight"].reshape(1, groups, cd, 1)
           + params["gn_bias"].reshape(1, groups, cd, 1))
    ze_ = jnp.transpose(zen, (0, 3, 1, 2))                        # (B, T, g, cd)

    diff = ze_[None] - emb[:, None, None, :, :]                   # (V,B,T,g,cd)
    d = jnp.sqrt(jnp.sum(diff ** 2, axis=-1))
    idx = jnp.argmin(d, axis=0)                                   # (B, T, g)
    onehot = jax.nn.one_hot(idx, V, dtype=jnp.float32)
    zq_btgc = jnp.einsum("btgv,vgc->btgc", onehot, emb)
    zq_bct = jnp.transpose(zq_btgc.reshape(B, T, dim), (0, 2, 1))
    ze_bct = zen.reshape(B, dim, T)

    hard_probs = onehot.reshape(B * T, groups, V).mean(axis=0)
    code_perplexity = jnp.sum(
        jnp.exp(-jnp.sum(hard_probs * jnp.log(hard_probs + 1e-7), axis=-1)))

    mse = jnp.mean((zq_bct - ze_bct) ** 2)
    kmeans_loss = mse + gamma * mse

    x_out = jnp.transpose(zq_bct, (0, 2, 1)) if time_first else zq_bct
    return {"x": x_out, "targets": idx, "code_perplexity": code_perplexity,
            "kmeans_loss": kmeans_loss}


if __name__ == "__main__":
    B, T = 2, 16
    dim = vq_dim = 32
    groups = 2
    num_vars = 8
    combine_groups = False
    time_first = True
    gamma = 0.25
    var_dim = vq_dim // groups
    num_groups = 1 if combine_groups else groups

    key = jax.random.PRNGKey(0)
    k_emb, k_conv, k_x = jax.random.split(key, 3)
    params = {
        "embedding": 0.01 * jax.random.normal(
            k_emb, (num_vars, num_groups, var_dim), jnp.float32),
        "conv_weight": 0.1 * jax.random.normal(
            k_conv, (dim, var_dim, 1), jnp.float32),              # grouped Conv1d
        "gn_weight": jnp.ones((dim,), jnp.float32),
        "gn_bias": jnp.zeros((dim,), jnp.float32),
    }
    x = jax.random.normal(k_x, (B, T, dim), jnp.float32)          # B x T x C

    common = dict(groups=groups, num_vars=num_vars,
                  combine_groups=combine_groups, time_first=time_first,
                  gamma=gamma, produce_targets=True)

    # 1) Default performance config: bf16 MXU operands, fused small-group path.
    fast = kmeans_vq_forward(x, params, **common)
    jax.block_until_ready((fast["x"], fast["targets"],
                           fast["code_perplexity"], fast["kmeans_loss"]))
    assert fast["x"].shape == (B, T, vq_dim)
    assert fast["targets"].shape == (B, T, groups)
    assert bool(jnp.all(jnp.isfinite(fast["x"])))
    assert bool(jnp.isfinite(fast["kmeans_loss"]))
    assert bool(jnp.isfinite(fast["code_perplexity"]))

    # 2) Strict fp32 configs (fused and unfused paths) vs the pure-JAX ref.
    ref = reference_forward(x, params, groups=groups, num_vars=num_vars,
                            combine_groups=combine_groups,
                            time_first=time_first, gamma=gamma)
    for force_fuse in (True, False):
        out = kmeans_vq_forward(x, params, **common,
                                conv_dtype=jnp.float32,
                                score_dtype=jnp.float32,
                                gather_dtype=jnp.float32,
                                fuse_groups=force_fuse)
        jax.block_until_ready(out["x"])
        assert out["x"].shape == (B, T, vq_dim)
        assert out["targets"].shape == (B, T, groups)
        assert jnp.allclose(out["x"], ref["x"], atol=1e-4, rtol=1e-4)
        assert jnp.array_equal(out["targets"], ref["targets"])
        assert jnp.allclose(out["code_perplexity"], ref["code_perplexity"],
                            atol=1e-4, rtol=1e-4)
        assert jnp.allclose(out["kmeans_loss"], ref["kmeans_loss"],
                            atol=1e-5, rtol=1e-4)

    print("KERNEL_OK")
</pallas_src>

<mosaic_0001>
module attributes {stable_mosaic.version = 11 : i64} {
  func.func @_gn_stats_kernel(%arg0: i32, %arg1: i32, %arg2: memref<1x2x16x128xf32, #tpu.memory_space<vmem>>, %arg3: memref<2x16x16xf32, #tpu.memory_space<vmem>>, %arg4: memref<2x16x1xf32, #tpu.memory_space<vmem>>, %arg5: memref<1x1x1x128xf32, #tpu.memory_space<vmem>>) attributes {dimension_semantics = [#tpu.dimension_semantics<parallel>, #tpu.dimension_semantics<parallel>], iteration_bounds = array<i64: 2, 1>, scalar_prefetch = 0 : i64, scratch_operands = 0 : i64, tpu.core_type = #tpu.core_type<tc>, window_params = [{transform_indices = @transform_0, window_bounds = array<i64: 1, 2, 16, 128>}, {pipeline_mode = #tpu.pipeline_mode<synchronous>, transform_indices = @transform_1, window_bounds = array<i64: 2, 16, 16>}, {pipeline_mode = #tpu.pipeline_mode<synchronous>, transform_indices = @transform_2, window_bounds = array<i64: 2, 16, 1>}, {transform_indices = @transform_3, window_bounds = array<i64: 1, 1, 1, 128>}]} {
    %c0 = arith.constant 0 : index
    %c0_0 = arith.constant 0 : index
    %c0_1 = arith.constant 0 : index
    %c0_2 = arith.constant 0 : index
    %0 = vector.load %arg2[%c0, %c0_0, %c0_1, %c0_2] : memref<1x2x16x128xf32, #tpu.memory_space<vmem>>, vector<1x1x16x128xf32>
    %1 = vector.shape_cast %0 : vector<1x1x16x128xf32> to vector<16x128xf32>
    %2 = arith.truncf %1 : vector<16x128xf32> to vector<16x128xbf16>
    %cst = arith.constant dense<0.000000e+00> : vector<16x16xf32>
    %3 = tpu.matmul %2, %2, %cst {dimension_numbers = #tpu.dot_dimension_numbers<[1], [1], [0], [0], [0, 0, 1, 0], [], []>} : vector<16x128xbf16>, vector<16x128xbf16>, vector<16x16xf32> -> vector<16x16xf32>
    %c0_3 = arith.constant 0 : index
    %c0_4 = arith.constant 0 : index
    %c0_5 = arith.constant 0 : index
    %4 = vector.load %arg3[%c0_3, %c0_4, %c0_5] : memref<2x16x16xf32, #tpu.memory_space<vmem>>, vector<1x16x16xf32>
    %5 = vector.shape_cast %4 : vector<1x16x16xf32> to vector<16x16xf32>
    %6 = arith.mulf %5, %3 : vector<16x16xf32>
    %7 = vector.shape_cast %6 : vector<16x16xf32> to vector<1x16x16xf32>
    %cst_6 = arith.constant dense<0.000000e+00> : vector<1xf32>
    %8 = vector.multi_reduction <add>, %7, %cst_6 [1, 2] : vector<1x16x16xf32> to vector<1xf32>
    %9 = vector.shape_cast %8 : vector<1xf32> to vector<1x1x1xf32>
    %10 = vector.extract %9[0, 0, 0] : f32 from vector<1x1x1xf32>
    %c0_7 = arith.constant 0 : index
    %c0_8 = arith.constant 0 : index
    %c0_9 = arith.constant 0 : index
    %11 = vector.load %arg4[%c0_7, %c0_8, %c0_9] : memref<2x16x1xf32, #tpu.memory_space<vmem>>, vector<1x16x1xf32>
    %12 = vector.shape_cast %11 : vector<1x16x1xf32> to vector<16x1xf32>
    %13 = vector.broadcast %12 : vector<16x1xf32> to vector<16x128xf32>
    %14 = arith.mulf %13, %1 : vector<16x128xf32>
    %15 = vector.shape_cast %14 : vector<16x128xf32> to vector<1x16x128xf32>
    %cst_10 = arith.constant dense<0.000000e+00> : vector<1xf32>
    %16 = vector.multi_reduction <add>, %15, %cst_10 [1, 2] : vector<1x16x128xf32> to vector<1xf32>
    %17 = vector.shape_cast %16 : vector<1xf32> to vector<1x1x1xf32>
    %18 = vector.extract %17[0, 0, 0] : f32 from vector<1x1x1xf32>
    %c0_11 = arith.constant 0 : index
    %c1 = arith.constant 1 : index
    %c0_12 = arith.constant 0 : index
    %c0_13 = arith.constant 0 : index
    %19 = vector.load %arg2[%c0_11, %c1, %c0_12, %c0_13] : memref<1x2x16x128xf32, #tpu.memory_space<vmem>>, vector<1x1x16x128xf32>
    %20 = vector.shape_cast %19 : vector<1x1x16x128xf32> to vector<16x128xf32>
    %21 = arith.truncf %20 : vector<16x128xf32> to vector<16x128xbf16>
    %cst_14 = arith.constant dense<0.000000e+00> : vector<16x16xf32>
    %22 = tpu.matmul %21, %21, %cst_14 {dimension_numbers = #tpu.dot_dimension_numbers<[1], [1], [0], [0], [0, 0, 1, 0], [], []>} : vector<16x128xbf16>, vector<16x128xbf16>, vector<16x16xf32> -> vector<16x16xf32>
    %c1_15 = arith.constant 1 : index
    %c0_16 = arith.constant 0 : index
    %c0_17 = arith.constant 0 : index
    %23 = vector.load %arg3[%c1_15, %c0_16, %c0_17] : memref<2x16x16xf32, #tpu.memory_space<vmem>>, vector<1x16x16xf32>
    %24 = vector.shape_cast %23 : vector<1x16x16xf32> to vector<16x16xf32>
    %25 = arith.mulf %24, %22 : vector<16x16xf32>
    %26 = vector.shape_cast %25 : vector<16x16xf32> to vector<1x16x16xf32>
    %cst_18 = arith.constant dense<0.000000e+00> : vector<1xf32>
    %27 = vector.multi_reduction <add>, %26, %cst_18 [1, 2] : vector<1x16x16xf32> to vector<1xf32>
    %28 = vector.shape_cast %27 : vector<1xf32> to vector<1x1x1xf32>
    %29 = vector.extract %28[0, 0, 0] : f32 from vector<1x1x1xf32>
    %c1_19 = arith.constant 1 : index
    %c0_20 = arith.constant 0 : index
    %c0_21 = arith.constant 0 : index
    %30 = vector.load %arg4[%c1_19, %c0_20, %c0_21] : memref<2x16x1xf32, #tpu.memory_space<vmem>>, vector<1x16x1xf32>
    %31 = vector.shape_cast %30 : vector<1x16x1xf32> to vector<16x1xf32>
    %32 = vector.broadcast %31 : vector<16x1xf32> to vector<16x128xf32>
    %33 = arith.mulf %32, %20 : vector<16x128xf32>
    %34 = vector.shape_cast %33 : vector<16x128xf32> to vector<1x16x128xf32>
    %cst_22 = arith.constant dense<0.000000e+00> : vector<1xf32>
    %35 = vector.multi_reduction <add>, %34, %cst_22 [1, 2] : vector<1x16x128xf32> to vector<1xf32>
    %36 = vector.shape_cast %35 : vector<1xf32> to vector<1x1x1xf32>
    %37 = vector.extract %36[0, 0, 0] : f32 from vector<1x1x1xf32>
    %38 = vector.broadcast %18 : f32 to vector<1xf32>
    %39 = vector.broadcast %37 : f32 to vector<1xf32>
    %40 = vector.broadcast %10 : f32 to vector<1xf32>
    %41 = vector.broadcast %29 : f32 to vector<1xf32>
    %42 = tpu.concatenate %38, %39, %40, %41 in 0 : vector<1xf32>, vector<1xf32>, vector<1xf32>, vector<1xf32> -> vector<4xf32>
    %cst_23 = arith.constant 0.000000e+00 : f32
    %43 = vector.broadcast %cst_23 : f32 to vector<124xf32>
    %44 = tpu.concatenate %42, %43 in 0 : vector<4xf32>, vector<124xf32> -> vector<128xf32>
    %45 = vector.shape_cast %44 : vector<128xf32> to vector<1x128xf32>
    %c0_24 = arith.constant 0 : index
    %c0_25 = arith.constant 0 : index
    %c0_26 = arith.constant 0 : index
    %c0_27 = arith.constant 0 : index
    %46 = vector.load %arg5[%c0_24, %c0_25, %c0_26, %c0_27] : memref<1x1x1x128xf32, #tpu.memory_space<vmem>>, vector<1x1x1x128xf32>
    %47 = vector.shape_cast %46 : vector<1x1x1x128xf32> to vector<1x128xf32>
    %48 = vector.shape_cast %45 : vector<1x128xf32> to vector<1x1x1x128xf32>
    tpu.vector_store %arg5[%c0_24, %c0_25, %c0_26, %c0_27], %48 {strides = array<i32>} : memref<1x1x1x128xf32, #tpu.memory_space<vmem>>, vector<1x1x1x128xf32>,
    return
  }
  func.func @transform_0(%arg0: i32, %arg1: i32) -> (i32, i32, i32, i32) {
    %c0_i32 = arith.constant 0 : i32
    %c0_i32_0 = arith.constant 0 : i32
    %c0_i32_1 = arith.constant 0 : i32
    return %arg0, %c0_i32, %c0_i32_0, %arg1 : i32, i32, i32, i32
  }
  func.func @transform_1(%arg0: i32, %arg1: i32) -> (i32, i32, i32) {
    %c0_i32 = arith.constant 0 : i32
    %c0_i32_0 = arith.constant 0 : i32
    %c0_i32_1 = arith.constant 0 : i32
    %c0_i32_2 = arith.constant 0 : i32
    return %c0_i32, %c0_i32_0, %c0_i32_1 : i32, i32, i32
  }
  func.func @transform_2(%arg0: i32, %arg1: i32) -> (i32, i32, i32) {
    %c0_i32 = arith.constant 0 : i32
    %c0_i32_0 = arith.constant 0 : i32
    %c0_i32_1 = arith.constant 0 : i32
    %c0_i32_2 = arith.constant 0 : i32
    return %c0_i32, %c0_i32_0, %c0_i32_1 : i32, i32, i32
  }
  func.func @transform_3(%arg0: i32, %arg1: i32) -> (i32, i32, i32, i32) {
    %c0_i32 = arith.constant 0 : i32
    %c0_i32_0 = arith.constant 0 : i32
    %c0_i32_1 = arith.constant 0 : i32
    return %arg0, %arg1, %c0_i32, %c0_i32_0 : i32, i32, i32, i32
  }
}

module attributes {stable_mosaic.version = 11 : i64} {
  func.func @_gn_stats_kernel(%arg0: i32, %arg1: i32, %arg2: memref<1x2x16x128xf32, #tpu.memory_space<vmem>>, %arg3: memref<2x16x16xf32, #tpu.memory_space<vmem>>, %arg4: memref<2x16x1xf32, #tpu.memory_space<vmem>>, %arg5: memref<1x1x1x128xf32, #tpu.memory_space<vmem>>) attributes {dimension_semantics = [#tpu.dimension_semantics<parallel>, #tpu.dimension_semantics<parallel>], iteration_bounds = array<i64: 2, 1>, scalar_prefetch = 0 : i64, scratch_operands = 0 : i64, tpu.core_type = #tpu.core_type<tc>, window_params = [{transform_indices = @transform_0, window_bounds = array<i64: 1, 2, 16, 128>}, {pipeline_mode = #tpu.pipeline_mode<synchronous>, transform_indices = @transform_1, window_bounds = array<i64: 2, 16, 16>}, {pipeline_mode = #tpu.pipeline_mode<synchronous>, transform_indices = @transform_2, window_bounds = array<i64: 2, 16, 1>}, {transform_indices = @transform_3, window_bounds = array<i64: 1, 1, 1, 128>}]} {
    %c0 = arith.constant 0 : index
    %c0_0 = arith.constant 0 : index
    %c0_1 = arith.constant 0 : index
    %c0_2 = arith.constant 0 : index
    %0 = vector.load %arg2[%c0, %c0_0, %c0_1, %c0_2] : memref<1x2x16x128xf32, #tpu.memory_space<vmem>>, vector<1x1x16x128xf32>
    %1 = vector.shape_cast %0 : vector<1x1x16x128xf32> to vector<16x128xf32>
    %2 = arith.truncf %1 : vector<16x128xf32> to vector<16x128xbf16>
    %cst = arith.constant dense<0.000000e+00> : vector<16x16xf32>
    %3 = tpu.matmul %2, %2, %cst {dimension_numbers = #tpu.dot_dimension_numbers<[1], [1], [0], [0], [0, 0, 1, 0], [], []>} : vector<16x128xbf16>, vector<16x128xbf16>, vector<16x16xf32> -> vector<16x16xf32>
    %c0_3 = arith.constant 0 : index
    %c0_4 = arith.constant 0 : index
    %c0_5 = arith.constant 0 : index
    %4 = vector.load %arg3[%c0_3, %c0_4, %c0_5] : memref<2x16x16xf32, #tpu.memory_space<vmem>>, vector<1x16x16xf32>
    %5 = vector.shape_cast %4 : vector<1x16x16xf32> to vector<16x16xf32>
    %6 = arith.mulf %5, %3 : vector<16x16xf32>
    %7 = vector.shape_cast %6 : vector<16x16xf32> to vector<1x16x16xf32>
    %cst_6 = arith.constant dense<0.000000e+00> : vector<1xf32>
    %8 = vector.multi_reduction <add>, %7, %cst_6 [1, 2] : vector<1x16x16xf32> to vector<1xf32>
    %9 = vector.shape_cast %8 : vector<1xf32> to vector<1x1x1xf32>
    %10 = vector.extract %9[0, 0, 0] : f32 from vector<1x1x1xf32>
    %c0_7 = arith.constant 0 : index
    %c0_8 = arith.constant 0 : index
    %c0_9 = arith.constant 0 : index
    %11 = vector.load %arg4[%c0_7, %c0_8, %c0_9] : memref<2x16x1xf32, #tpu.memory_space<vmem>>, vector<1x16x1xf32>
    %12 = vector.shape_cast %11 : vector<1x16x1xf32> to vector<16x1xf32>
    %13 = vector.broadcast %12 : vector<16x1xf32> to vector<16x128xf32>
    %14 = arith.mulf %13, %1 : vector<16x128xf32>
    %15 = vector.shape_cast %14 : vector<16x128xf32> to vector<1x16x128xf32>
    %cst_10 = arith.constant dense<0.000000e+00> : vector<1xf32>
    %16 = vector.multi_reduction <add>, %15, %cst_10 [1, 2] : vector<1x16x128xf32> to vector<1xf32>
    %17 = vector.shape_cast %16 : vector<1xf32> to vector<1x1x1xf32>
    %18 = vector.extract %17[0, 0, 0] : f32 from vector<1x1x1xf32>
    %c0_11 = arith.constant 0 : index
    %c1 = arith.constant 1 : index
    %c0_12 = arith.constant 0 : index
    %c0_13 = arith.constant 0 : index
    %19 = vector.load %arg2[%c0_11, %c1, %c0_12, %c0_13] : memref<1x2x16x128xf32, #tpu.memory_space<vmem>>, vector<1x1x16x128xf32>
    %20 = vector.shape_cast %19 : vector<1x1x16x128xf32> to vector<16x128xf32>
    %21 = arith.truncf %20 : vector<16x128xf32> to vector<16x128xbf16>
    %cst_14 = arith.constant dense<0.000000e+00> : vector<16x16xf32>
    %22 = tpu.matmul %21, %21, %cst_14 {dimension_numbers = #tpu.dot_dimension_numbers<[1], [1], [0], [0], [0, 0, 1, 0], [], []>} : vector<16x128xbf16>, vector<16x128xbf16>, vector<16x16xf32> -> vector<16x16xf32>
    %c1_15 = arith.constant 1 : index
    %c0_16 = arith.constant 0 : index
    %c0_17 = arith.constant 0 : index
    %23 = vector.load %arg3[%c1_15, %c0_16, %c0_17] : memref<2x16x16xf32, #tpu.memory_space<vmem>>, vector<1x16x16xf32>
    %24 = vector.shape_cast %23 : vector<1x16x16xf32> to vector<16x16xf32>
    %25 = arith.mulf %24, %22 : vector<16x16xf32>
    %26 = vector.shape_cast %25 : vector<16x16xf32> to vector<1x16x16xf32>
    %cst_18 = arith.constant dense<0.000000e+00> : vector<1xf32>
    %27 = vector.multi_reduction <add>, %26, %cst_18 [1, 2] : vector<1x16x16xf32> to vector<1xf32>
    %28 = vector.shape_cast %27 : vector<1xf32> to vector<1x1x1xf32>
    %29 = vector.extract %28[0, 0, 0] : f32 from vector<1x1x1xf32>
    %c1_19 = arith.constant 1 : index
    %c0_20 = arith.constant 0 : index
    %c0_21 = arith.constant 0 : index
    %30 = vector.load %arg4[%c1_19, %c0_20, %c0_21] : memref<2x16x1xf32, #tpu.memory_space<vmem>>, vector<1x16x1xf32>
    %31 = vector.shape_cast %30 : vector<1x16x1xf32> to vector<16x1xf32>
    %32 = vector.broadcast %31 : vector<16x1xf32> to vector<16x128xf32>
    %33 = arith.mulf %32, %20 : vector<16x128xf32>
    %34 = vector.shape_cast %33 : vector<16x128xf32> to vector<1x16x128xf32>
    %cst_22 = arith.constant dense<0.000000e+00> : vector<1xf32>
    %35 = vector.multi_reduction <add>, %34, %cst_22 [1, 2] : vector<1x16x128xf32> to vector<1xf32>
    %36 = vector.shape_cast %35 : vector<1xf32> to vector<1x1x1xf32>
    %37 = vector.extract %36[0, 0, 0] : f32 from vector<1x1x1xf32>
    %38 = vector.broadcast %18 : f32 to vector<1xf32>
    %39 = vector.broadcast %37 : f32 to vector<1xf32>
    %40 = vector.broadcast %10 : f32 to vector<1xf32>
    %41 = vector.broadcast %29 : f32 to vector<1xf32>
    %42 = tpu.concatenate %38, %39, %40, %41 in 0 : vector<1xf32>, vector<1xf32>, vector<1xf32>, vector<1xf32> -> vector<4xf32>
    %cst_23 = arith.constant 0.000000e+00 : f32
    %43 = vector.broadcast %cst_23 : f32 to vector<124xf32>
    %44 = tpu.concatenate %42, %43 in 0 : vector<4xf32>, vector<124xf32> -> vector<128xf32>
    %45 = vector.shape_cast %44 : vector<128xf32> to vector<1x128xf32>
    %c0_24 = arith.constant 0 : index
    %c0_25 = arith.constant 0 : index
    %c0_26 = arith.constant 0 : index
    %c0_27 = arith.constant 0 : index
    %46 = vector.load %arg5[%c0_24, %c0_25, %c0_26, %c0_27] : memref<1x1x1x128xf32, #tpu.memory_space<vmem>>, vector<1x1x1x128xf32>
    %47 = vector.shape_cast %46 : vector<1x1x1x128xf32> to vector<1x128xf32>
    %48 = vector.shape_cast %45 : vector<1x128xf32> to vector<1x1x1x128xf32>
    tpu.vector_store %arg5[%c0_24, %c0_25, %c0_26, %c0_27], %48 {strides = array<i32>} : memref<1x1x1x128xf32, #tpu.memory_space<vmem>>, vector<1x1x1x128xf32>,
    return
  }
  func.func @transform_0(%arg0: i32, %arg1: i32) -> (i32, i32, i32, i32) {
    %c0_i32 = arith.constant 0 : i32
    %c0_i32_0 = arith.constant 0 : i32
    %c0_i32_1 = arith.constant 0 : i32
    return %arg0, %c0_i32, %c0_i32_0, %arg1 : i32, i32, i32, i32
  }
  func.func @transform_1(%arg0: i32, %arg1: i32) -> (i32, i32, i32) {
    %c0_i32 = arith.constant 0 : i32
    %c0_i32_0 = arith.constant 0 : i32
    %c0_i32_1 = arith.constant 0 : i32
    %c0_i32_2 = arith.constant 0 : i32
    return %c0_i32, %c0_i32_0, %c0_i32_1 : i32, i32, i32
  }
  func.func @transform_2(%arg0: i32, %arg1: i32) -> (i32, i32, i32) {
    %c0_i32 = arith.constant 0 : i32
    %c0_i32_0 = arith.constant 0 : i32
    %c0_i32_1 = arith.constant 0 : i32
    %c0_i32_2 = arith.constant 0 : i32
    return %c0_i32, %c0_i32_0, %c0_i32_1 : i32, i32, i32
  }
  func.func @transform_3(%arg0: i32, %arg1: i32) -> (i32, i32, i32, i32) {
    %c0_i32 = arith.constant 0 : i32
    %c0_i32_0 = arith.constant 0 : i32
    %c0_i32_1 = arith.constant 0 : i32
    return %arg0, %arg1, %c0_i32, %c0_i32_0 : i32, i32, i32, i32
  }
}

</mosaic_0001>

<llo_original>
// kernel: tpu_custom_call.1
$region0: #{tpu_custom_call.1}
  #allocation0 [shape = 'u32[]', space=smem, size = 0x4, offset = 0x4, fixed_abs, tag = 'smem constant byte address 0x4 - core index']
  #allocation1 [shape = 'u32[144,128]{1,0:T(1,128)}', space=vmem, size = 0x12000, scoped, tag = 'internal scratch']
  %s0 = inlined_call_operand.hbm [shape: f32[2,2,16,128], index: 0, kind: input, shape index: {}]
  %s1 = inlined_call_operand.vmem [shape: f32[2,16,16], index: 1, kind: input, shape index: {}]
  %s2 = inlined_call_operand.vmem [shape: f32[2,16,1], index: 2, kind: input, shape index: {}]
  %s3 = inlined_call_operand.hbm [shape: f32[2,1,1,128], index: 3, kind: output, shape index: {}]
  %s4 = sld [smem:[#allocation0]]
  $region49: #{tpu_custom_call.1} parent=0
    _
  %s6 = ssub.s32 1, %s4
  %s7 = scalar_select 0, %s6, %s4
  $region1: #{tpu_custom_call.1} parent=0
    #allocation2 [shape = 'u8[32768]{0}', space=vmem, size = 0x8000, scoped, tag = 'input window, operand 0']
    #allocation3 [shape = 's32[2]{0}', space=sflag, size = 0x8, scoped, tag = 'scoped memory for tpu_custom_call.1']
    #allocation4 [shape = 's32[2]{0}', space=sflag, size = 0x8, scoped, tag = 'scoped memory for tpu_custom_call.1']
    #allocation5 [shape = 'u8[1024]{0}', space=vmem, size = 0x400, scoped, tag = 'output window, operand 0']
    %8 = vsyncpa [#allocation3], 0
    %s9 = scalar_lea.sflag [#allocation3], 1
    %10 = vsyncpa %s9, 0
    %11 = vsyncpa [#allocation4], 0
    %s12 = scalar_lea.sflag [#allocation4], 1
    %13 = vsyncpa %s12, 0
    loop: start=0, step=1, limit=4
    $region2: #{tpu_custom_call.1} parent=1 // loop_pre_header
      _
    $region3: #{tpu_custom_call.1} parent=1 // loop_header
      %s15 = sphi 0, %s19
      %p16 = scmp.ge.s32.totalorder %s15, 4
      %s22 = sphi 0, %s34
      %s23 = sphi 0, %s30
      %s24 = sphi 0, %s22
      %s25 = sphi 0, %s23
      %s26 = sphi 0, %s24
      %s27 = sphi 0, %s25
      %s39 = sphi 0, %s41
      %s42 = sphi 0, %s39
      %s43 = sphi 0, %s42
      %s59 = sphi 0, %s43
      %s63 = sphi 0, %s63
      %s65 = sphi 0, %s63
      %s66 = sphi 0, %s65
      %s80 = sphi 0, %s66
      %s84 = sphi 0, %s84
      %s86 = sphi 0, %s84
      %s87 = sphi 0, %s86
      %s101 = sphi 0, %s87
      %s109 = sphi 0, %s111
      %s112 = sphi 0, %s109
      %s113 = sphi 0, %s112
      %s129 = sphi 0, %s113
    $region4: #{tpu_custom_call.1} parent=1 // loop_header_branch
      %18 = sbr.rel (%p16) target = $region8
    $region5: #{tpu_custom_call.1} parent=1 // loop_body
      %s20 = ssub.s32 %s15, 1
      %s21 = ssub.s32 %s15, 2
      %s28 = sadd.s32 1, %s23
      %p29 = scmp.ge.s32.totalorder %s28, 1
      %s30 = scalar_select %p29, 0, %s28
      %s31 = sadd.s32 1, %s22
      %s32 = scalar_select %p29, %s31, %s22
      %p33 = scmp.ge.s32.totalorder %s32, 2
      %s34 = scalar_select %p33, 0, %s32
      %s35 = ssub.s32 %s22, %s34
      %s36 = ssub.s32 %s23, %s30
      %s37 = sor.u32 %s35, %s36
      %p38 = scmp.eq.s32.totalorder %s37, 0
      %s40 = sadd.s32 %s39, 1
      %s41 = scalar_select %p38, %s39, %s40
      %p44 = pneg %p38
      %p45 = scmp.eq.s32.totalorder %s15, 1
      %p46 = por %p44, %p45
      %p47 = scmp.ne.s32.totalorder %s39, %s42
      %p48 = scmp.eq.s32.totalorder %s15, 0
      %p49 = por %p47, %p48
      %p50 = scmp.ne.s32.totalorder %s39, %s42
      %p51 = scmp.eq.s32.totalorder %s20, 1
      %p52 = por %p50, %p51
      %p53 = scmp.ne.s32.totalorder %s42, %s43
      %p54 = scmp.eq.s32.totalorder %s20, 0
      %p55 = por %p53, %p54
      %p56 = scmp.ne.s32.totalorder %s42, %s43
      %p57 = scmp.eq.s32.totalorder %s21, 1
      %p58 = por %p56, %p57
      %p60 = scmp.ne.s32.totalorder %s43, %s59
      %p61 = scmp.eq.s32.totalorder %s21, 0
      %p62 = por %p60, %p61
      %s64 = sadd.s32 %s63, 1
      %p67 = scmp.eq.s32.totalorder %s15, 1
      %p68 = scmp.ne.s32.totalorder %s63, %s65
      %p69 = scmp.eq.s32.totalorder %s15, 0
      %p70 = por %p68, %p69
      %p71 = scmp.ne.s32.totalorder %s63, %s65
      %p72 = scmp.eq.s32.totalorder %s20, 1
      %p73 = por %p71, %p72
      %p74 = scmp.ne.s32.totalorder %s65, %s66
      %p75 = scmp.eq.s32.totalorder %s20, 0
      %p76 = por %p74, %p75
      %p77 = scmp.ne.s32.totalorder %s65, %s66
      %p78 = scmp.eq.s32.totalorder %s21, 1
      %p79 = por %p77, %p78
      %p81 = scmp.ne.s32.totalorder %s66, %s80
      %p82 = scmp.eq.s32.totalorder %s21, 0
      %p83 = por %p81, %p82
      %s85 = sadd.s32 %s84, 1
      %p88 = scmp.eq.s32.totalorder %s15, 1
      %p89 = scmp.ne.s32.totalorder %s84, %s86
      %p90 = scmp.eq.s32.totalorder %s15, 0
      %p91 = por %p89, %p90
      %p92 = scmp.ne.s32.totalorder %s84, %s86
      %p93 = scmp.eq.s32.totalorder %s20, 1
      %p94 = por %p92, %p93
      %p95 = scmp.ne.s32.totalorder %s86, %s87
      %p96 = scmp.eq.s32.totalorder %s20, 0
      %p97 = por %p95, %p96
      %p98 = scmp.ne.s32.totalorder %s86, %s87
      %p99 = scmp.eq.s32.totalorder %s21, 1
      %p100 = por %p98, %p99
      %p102 = scmp.ne.s32.totalorder %s87, %s101
      %p103 = scmp.eq.s32.totalorder %s21, 0
      %p104 = por %p102, %p103
      %s105 = ssub.s32 %s22, %s34
      %s106 = ssub.s32 %s23, %s30
      %s107 = sor.u32 %s105, %s106
      %p108 = scmp.eq.s32.totalorder %s107, 0
      %s110 = sadd.s32 %s109, 1
      %s111 = scalar_select %p108, %s109, %s110
      %p114 = pneg %p108
      %p115 = scmp.eq.s32.totalorder %s15, 1
      %p116 = por %p114, %p115
      %p117 = scmp.ne.s32.totalorder %s109, %s112
      %p118 = scmp.eq.s32.totalorder %s15, 0
      %p119 = por %p117, %p118
      %p120 = scmp.ne.s32.totalorder %s109, %s112
      %p121 = scmp.eq.s32.totalorder %s20, 1
      %p122 = por %p120, %p121
      %p123 = scmp.ne.s32.totalorder %s112, %s113
      %p124 = scmp.eq.s32.totalorder %s20, 0
      %p125 = por %p123, %p124
      %p126 = scmp.ne.s32.totalorder %s112, %s113
      %p127 = scmp.eq.s32.totalorder %s21, 1
      %p128 = por %p126, %p127
      %p130 = scmp.ne.s32.totalorder %s113, %s129
      %p131 = scmp.eq.s32.totalorder %s21, 0
      %p132 = por %p130, %p131
      %p133 = scmp.le.s32.totalorder 1, %s15
      %p134 = scmp.lt.s32.totalorder %s15, 3
      %p135 = pnand %p133, %p134
      %p136 = pneg %p135
      // Predicated region
      $region9: #{tpu_custom_call.1} parent=5 // pred_check
        _
      $region10: #{tpu_custom_call.1} parent=5 // pred_check_branch
        %138 = sbr.rel (%p135) target = $region12
      $region11: #{tpu_custom_call.1} parent=5 // pred_region
        %s139 = ssub.s32 %s15, 1
        // Predicated region
        $region13: #{tpu_custom_call.1} parent=11 // pred_check
          %p140 = pneg %p76
        $region14: #{tpu_custom_call.1} parent=11 // pred_check_branch
          %142 = sbr.rel (%p140) target = $region16
        $region15: #{tpu_custom_call.1} parent=11 // pred_region
          _
        $region16: #{tpu_custom_call.1} parent=11 // pred_fallthru
          _
        // Predicated region
        $region17: #{tpu_custom_call.1} parent=11 // pred_check
          %p143 = pneg %p97
        $region18: #{tpu_custom_call.1} parent=11 // pred_check_branch
          %145 = sbr.rel (%p143) target = $region20
        $region19: #{tpu_custom_call.1} parent=11 // pred_region
          _
        $region20: #{tpu_custom_call.1} parent=11 // pred_fallthru
          _
      $region12: #{tpu_custom_call.1} parent=5 // pred_fallthru
        _
      %p146 = scmp.lt.s32.totalorder %s15, 2
      // Predicated region
      $region21: #{tpu_custom_call.1} parent=5 // pred_check
        %p147 = pneg %p146
      $region22: #{tpu_custom_call.1} parent=5 // pred_check_branch
        %149 = sbr.rel (%p147) target = $region24
      $region23: #{tpu_custom_call.1} parent=5 // pred_region
        // Predicated region
        $region25: #{tpu_custom_call.1} parent=23 // pred_check
          %p150 = pneg %p49
        $region26: #{tpu_custom_call.1} parent=23 // pred_check_branch
          %152 = sbr.rel (%p150) target = $region28
        $region27: #{tpu_custom_call.1} parent=23 // pred_region
          %s153 = sand.u32 %s39, 1
          %s154 = scalar_lea.sflag [#allocation3], %s153
          %s155 = sand.u32 %s39, 1
          %s156 = smul.addr %s155, 32
          %s157 = scalar_lea.vmem [#allocation2], %s156
          %s159 = ssub.s32 512, 512
          %160 = vsyncadd %s154, %s159
          %s161 = smul.addr %s22, 4
          %s162 = sadd.s32 %s23, %s161
          %s163 = smul.addr %s162, 128
          %s164 = scalar_lea.hbm %s0, %s163
          %s165 = sshll.u32 %s157, 4
          %s166 = int_to_ptr.vmem [resolvable:$true] %s165
          %171 = dma.hbm_to_vmem [thread:$0]  %s164, 512, %s166, %s154, 128, 128, 8
        $region28: #{tpu_custom_call.1} parent=23 // pred_fallthru
          _
      $region24: #{tpu_custom_call.1} parent=5 // pred_fallthru
        _
      %p172 = scmp.le.s32.totalorder 1, %s15
      %p173 = scmp.lt.s32.totalorder %s15, 3
      %p174 = pnand %p172, %p173
      %p175 = pneg %p174
      // Predicated region
      $region29: #{tpu_custom_call.1} parent=5 // pred_check
        _
      $region30: #{tpu_custom_call.1} parent=5 // pred_check_branch
        %177 = sbr.rel (%p174) target = $region32
      $region31: #{tpu_custom_call.1} parent=5 // pred_region
        %s178 = ssub.s32 %s15, 1
        %s179 = sand.u32 %s42, 1
        %s180 = scalar_lea.sflag [#allocation3], %s179
        %s181 = sand.u32 %s42, 1
        %s182 = smul.addr %s181, 32
        %s183 = scalar_lea.vmem [#allocation2], %s182
        // Predicated region
        $region33: #{tpu_custom_call.1} parent=31 // pred_check
          %p184 = pneg %p55
        $region34: #{tpu_custom_call.1} parent=31 // pred_check_branch
          %186 = sbr.rel (%p184) target = $region36
        $region35: #{tpu_custom_call.1} parent=31 // pred_region
          %187 = dma.done %s180, 512
        $region36: #{tpu_custom_call.1} parent=31 // pred_fallthru
          _
        %s188 = sand.u32 %s42, 1
        %s189 = scalar_lea.sflag [#allocation3], %s188
        %s190 = sand.u32 %s42, 1
        %s191 = smul.addr %s190, 32
        %s192 = scalar_lea.vmem [#allocation2], %s191
        %p193 = pneg %p55
        %p194 = pneg %p52
        %p195 = pneg %p76
        %p196 = pneg %p73
        %p197 = pneg %p97
        %p198 = pneg %p94
        %p199 = pneg %p125
        %p200 = pneg %p122
        %s201 = sand.u32 %s112, 1
        %s202 = scalar_lea.sflag [#allocation4], %s201
        %s203 = sand.u32 %s112, 1
        %s204 = scalar_lea.vmem [#allocation5], %s203
        %v206 = vld [vmem:[%s183] sm:$0xff]
        %v207 = vld [vmem:[%s183 + $0x8] sm:$0xff]
        %v208 = vpack.c.bf16 %v207, %v206
        %209 = vmatprep.subr.bf16.mxu0 0
        %210 = vmatpush1.bf16.xpose.msra.mxu0 %v208
        %211 = vmatprep.subr.bf16.mxu0 0
        %212 = vmatpush1.bf16.xpose.msra.mxu0 0
        %213 = vmatprep.subr.bf16.mxu0 0
        %214 = vmatpush1.bf16.xpose.msra.mxu0 0
        %215 = vmatprep.subr.bf16.mxu0 0
        %216 = vmatpush1.bf16.xpose.msra.mxu0 0
        %217 = vmatprep.subr.bf16.mxu0 0
        %218 = vmatpush1.bf16.xpose.msra.mxu0 0
        %219 = vmatprep.subr.bf16.mxu0 0
        %220 = vmatpush1.bf16.xpose.msra.mxu0 0
        %221 = vmatprep.subr.bf16.mxu0 0
        %222 = vmatpush1.bf16.xpose.msra.mxu0 0
        %223 = vmatprep.subr.bf16.mxu0 0
        %224 = vmatpush1.bf16.xpose.msra.mxu0 0
        %225 = vmatprep.subr.bf16.mxu0 0
        %226 = vmatpush1.bf16.xpose.msra.mxu0 0
        %227 = vmatprep.subr.bf16.mxu0 0
        %228 = vmatpush1.bf16.xpose.msra.mxu0 0
        %229 = vmatprep.subr.bf16.mxu0 0
        %230 = vmatpush1.bf16.xpose.msra.mxu0 0
        %231 = vmatprep.subr.bf16.mxu0 0
        %232 = vmatpush1.bf16.xpose.msra.mxu0 0
        %233 = vmatprep.subr.bf16.mxu0 0
        %234 = vmatpush1.bf16.xpose.msra.mxu0 0
        %235 = vmatprep.subr.bf16.mxu0 0
        %236 = vmatpush1.bf16.xpose.msra.mxu0 0
        %237 = vmatprep.subr.bf16.mxu0 0
        %238 = vmatpush1.bf16.xpose.msra.mxu0 0
        %239 = vmatprep.subr.bf16.mxu0 0
        %240 = vmatpush1.bf16.xpose.msra.mxu0 0
        %241 = vmatprep.mubr.bf16.mxu0 0
        %242 = vmatmul.mubr.bf16.gmra.mrb[0].mxu0 %v208
        %v243 = vpop.f32.mrb[0].mxu0
        %v244 = vadd.f32 0.0, %v243
        %v245 = vpop.f32.mrb[0].mxu0
        %v246 = vpop.f32.mrb[0].mxu0
        %v247 = vadd.f32 0.0, %v246
        %v248 = vpop.f32.mrb[0].mxu0
        %249 = vdwg.mxu0
        %v250 = vld [vmem:[%s1] sm:$0xff]
        %v251 = vld [vmem:[%s1 + $0x8] sm:$0xff]
        %v252 = vmul.f32 %v250, %v244
        %v253 = vmul.f32 %v251, %v247
        %vm254 = vcmask 130048
        %v255 = vsel %vm254, %v252, 0.0
        %v256 = vsel %vm254, %v253, 0.0
        %v257 = vadd.f32 %v255, %v256
        %258 = vadd.xlane.f32.xlu0 %v257
        %v259 = vpop.xlane.xlu0 %258
        %v260 = vrot.slane %v259, 4
        %v261 = vadd.f32 %v259, %v260
        %v262 = vrot.slane %v261, 2
        %v263 = vadd.f32 %v261, %v262
        %v264 = vrot.slane %v263, 1
        %v265 = vadd.f32 %v263, %v264
        %s266 = vtos %v265
        %v267 = vld [vmem:[%s2] sm:$0xff]
        %v268 = vld [vmem:[%s2 + $0x8] sm:$0xff]
        %270 = vset.pattern.permute.xlu0 0
        %271 = vperm.xlu0 %270, %v267
        %v272 = vpop.permute.xlu0 %271
        %275 = vset.pattern.permute.xlu0 0
        %276 = vperm.xlu0 %275, %v268
        %v277 = vpop.permute.xlu0 %276
        %v279 = vmul.f32 %v272, %v206
        %v280 = vmul.f32 %v277, %v207
        %v281 = vadd.f32 %v279, %v280
        %282 = vadd.xlane.f32.xlu0 %v281
        %v283 = vpop.xlane.xlu0 %282
        %v284 = vrot.slane %v283, 4
        %v285 = vadd.f32 %v283, %v284
        %v286 = vrot.slane %v285, 2
        %v287 = vadd.f32 %v285, %v286
        %v288 = vrot.slane %v287, 1
        %v289 = vadd.f32 %v287, %v288
        %s290 = vtos %v289
        %s291 = scalar_lea.vmem %s183, 16 [#allocation2]
        %v292 = vld [vmem:[%s291] sm:$0xff]
        %v293 = vld [vmem:[%s291 + $0x8] sm:$0xff]
        %v294 = vpack.c.bf16 %v293, %v292
        %295 = vmatprep.subr.bf16.mxu0 0
        %296 = vmatpush1.bf16.xpose.msra.mxu0 %v294
        %297 = vmatprep.subr.bf16.mxu0 0
        %298 = vmatpush1.bf16.xpose.msra.mxu0 0
        %299 = vmatprep.subr.bf16.mxu0 0
        %300 = vmatpush1.bf16.xpose.msra.mxu0 0
        %301 = vmatprep.subr.bf16.mxu0 0
        %302 = vmatpush1.bf16.xpose.msra.mxu0 0
        %303 = vmatprep.subr.bf16.mxu0 0
        %304 = vmatpush1.bf16.xpose.msra.mxu0 0
        %305 = vmatprep.subr.bf16.mxu0 0
        %306 = vmatpush1.bf16.xpose.msra.mxu0 0
        %307 = vmatprep.subr.bf16.mxu0 0
        %308 = vmatpush1.bf16.xpose.msra.mxu0 0
        %309 = vmatprep.subr.bf16.mxu0 0
        %310 = vmatpush1.bf16.xpose.msra.mxu0 0
        %311 = vmatprep.subr.bf16.mxu0 0
        %312 = vmatpush1.bf16.xpose.msra.mxu0 0
        %313 = vmatprep.subr.bf16.mxu0 0
        %314 = vmatpush1.bf16.xpose.msra.mxu0 0
        %315 = vmatprep.subr.bf16.mxu0 0
        %316 = vmatpush1.bf16.xpose.msra.mxu0 0
        %317 = vmatprep.subr.bf16.mxu0 0
        %318 = vmatpush1.bf16.xpose.msra.mxu0 0
        %319 = vmatprep.subr.bf16.mxu0 0
        %320 = vmatpush1.bf16.xpose.msra.mxu0 0
        %321 = vmatprep.subr.bf16.mxu0 0
        %322 = vmatpush1.bf16.xpose.msra.mxu0 0
        %323 = vmatprep.subr.bf16.mxu0 0
        %324 = vmatpush1.bf16.xpose.msra.mxu0 0
        %325 = vmatprep.subr.bf16.mxu0 0
        %326 = vmatpush1.bf16.xpose.msra.mxu0 0
        %327 = vmatprep.mubr.bf16.mxu0 0
        %328 = vmatmul.mubr.bf16.gmra.mrb[0].mxu0 %v294
        %v329 = vpop.f32.mrb[0].mxu0
        %v330 = vadd.f32 0.0, %v329
        %v331 = vpop.f32.mrb[0].mxu0
        %v332 = vpop.f32.mrb[0].mxu0
        %v333 = vadd.f32 0.0, %v332
        %v334 = vpop.f32.mrb[0].mxu0
        %335 = vdwg.mxu0
        %s336 = scalar_lea.vmem %s1, 16
        %v337 = vld [vmem:[%s336] sm:$0xff]
        %v338 = vld [vmem:[%s336 + $0x8] sm:$0xff]
        %v339 = vmul.f32 %v337, %v330
        %v340 = vmul.f32 %v338, %v333
        %v341 = vsel %vm254, %v339, 0.0
        %v342 = vsel %vm254, %v340, 0.0
        %v343 = vadd.f32 %v341, %v342
        %344 = vadd.xlane.f32.xlu0 %v343
        %v345 = vpop.xlane.xlu0 %344
        %v346 = vrot.slane %v345, 4
        %v347 = vadd.f32 %v345, %v346
        %v348 = vrot.slane %v347, 2
        %v349 = vadd.f32 %v347, %v348
        %v350 = vrot.slane %v349, 1
        %v351 = vadd.f32 %v349, %v350
        %s352 = vtos %v351
        %s353 = scalar_lea.vmem %s2, 16
        %v354 = vld [vmem:[%s353] sm:$0xff]
        %v355 = vld [vmem:[%s353 + $0x8] sm:$0xff]
        %357 = vset.pattern.permute.xlu0 0
        %358 = vperm.xlu0 %357, %v354
        %v359 = vpop.permute.xlu0 %358
        %362 = vset.pattern.permute.xlu0 0
        %363 = vperm.xlu0 %362, %v355
        %v364 = vpop.permute.xlu0 %363
        %v366 = vmul.f32 %v359, %v292
        %v367 = vmul.f32 %v364, %v293
        %v368 = vadd.f32 %v366, %v367
        %369 = vadd.xlane.f32.xlu0 %v368
        %v370 = vpop.xlane.xlu0 %369
        %v371 = vrot.slane %v370, 4
        %v372 = vadd.f32 %v370, %v371
        %v373 = vrot.slane %v372, 2
        %v374 = vadd.f32 %v372, %v373
        %v375 = vrot.slane %v374, 1
        %v376 = vadd.f32 %v374, %v375
        %s377 = vtos %v376
        %v378 = vstv %s290
        %v379 = vstv %s377
        %v380 = vstv %s266
        %v381 = vstv %s352
        %v382 = vlaneseq
        %vm383 = vcmp.ge.s32.totalorder %v382, 0
        %vm384 = vcmp.lt.s32.totalorder %v382, 1
        %vm385 = vmand %vm383, %vm384
        %v386 = vsel %vm385, %v378, %v379
        %vm387 = vcmp.lt.s32.totalorder %v382, 2
        %vm388 = vmand %vm383, %vm387
        %v389 = vsel %vm388, %v386, %v380
        %vm390 = vcmp.lt.s32.totalorder %v382, 3
        %vm391 = vmand %vm383, %vm390
        %v392 = vsel %vm391, %v389, %v381
        %vm393 = vcmp.lt.s32.totalorder %v382, 4
        %vm394 = vmand %vm383, %vm393
        %v395 = vsel %vm394, %v392, 0.0
        %396 = vst [vmem:[%s204] sm:$0x1] %v395
        %s397 = sand.u32 %s112, 1
        %s398 = scalar_lea.sflag [#allocation4], %s397
        %s399 = sand.u32 %s112, 1
        %s400 = scalar_lea.vmem [#allocation5], %s399
        // Predicated region
        $region37: #{tpu_custom_call.1} parent=31 // pred_check
          %p401 = pneg %p122
        $region38: #{tpu_custom_call.1} parent=31 // pred_check_branch
          %403 = sbr.rel (%p401) target = $region40
        $region39: #{tpu_custom_call.1} parent=31 // pred_region
          %s405 = ssub.s32 16, 16
          %406 = vsyncadd %s398, %s405
          %s407 = sadd.s32 %s25, %s24
          %s408 = smul.addr %s407, 16
          %s409 = scalar_lea.hbm %s3, %s408
          %s411 = sshll.u32 %s400, 4
          %s412 = int_to_ptr.vmem [resolvable:$true] %s411
          %414 = dma.vmem_to_hbm [thread:$0]  %s412, 16, %s409, %s398
        $region40: #{tpu_custom_call.1} parent=31 // pred_fallthru
          _
      $region32: #{tpu_custom_call.1} parent=5 // pred_fallthru
        _
      %p415 = scmp.le.s32.totalorder 2, %s15
      // Predicated region
      $region41: #{tpu_custom_call.1} parent=5 // pred_check
        %p416 = pneg %p415
      $region42: #{tpu_custom_call.1} parent=5 // pred_check_branch
        %418 = sbr.rel (%p416) target = $region44
      $region43: #{tpu_custom_call.1} parent=5 // pred_region
        %s419 = ssub.s32 %s15, 2
        // Predicated region
        $region45: #{tpu_custom_call.1} parent=43 // pred_check
          %p420 = pneg %p128
        $region46: #{tpu_custom_call.1} parent=43 // pred_check_branch
          %422 = sbr.rel (%p420) target = $region48
        $region47: #{tpu_custom_call.1} parent=43 // pred_region
          %s423 = sand.u32 %s113, 1
          %s424 = scalar_lea.sflag [#allocation4], %s423
          %s425 = sand.u32 %s113, 1
          %s426 = scalar_lea.vmem [#allocation5], %s425
          %427 = dma.done %s424, 16
        $region48: #{tpu_custom_call.1} parent=43 // pred_fallthru
          _
      $region44: #{tpu_custom_call.1} parent=5 // pred_fallthru
        _
    $region6: #{tpu_custom_call.1} parent=1 // loop_footer
      %s19 = sadd.s32 1, %s15
    $region7: #{tpu_custom_call.1} parent=1 // loop_footer_branch
      %14 = sbr.rel target = $region3
    $region8: #{tpu_custom_call.1} parent=1 // loop_exit
      _
    %428 = vsyncpa [#allocation3], 1
    %s429 = scalar_lea.sflag [#allocation3], 1
    %430 = vsyncpa %s429, 1
    %431 = vsyncpa [#allocation4], 1
    %s432 = scalar_lea.sflag [#allocation4], 1
    %433 = vsyncpa %s432, 1

// kernel: tpu_custom_call.1
$region0: #{tpu_custom_call.1}
  #allocation0 [shape = 'u32[]', space=smem, size = 0x4, offset = 0x4, fixed_abs, tag = 'smem constant byte address 0x4 - core index']
  #allocation1 [shape = 'u32[144,128]{1,0:T(1,128)}', space=vmem, size = 0x12000, scoped, tag = 'internal scratch']
  %s0 = inlined_call_operand.hbm [shape: f32[2,2,16,128], index: 0, kind: input, shape index: {}]
  %s1 = inlined_call_operand.vmem [shape: f32[2,16,16], index: 1, kind: input, shape index: {}]
  %s2 = inlined_call_operand.vmem [shape: f32[2,16,1], index: 2, kind: input, shape index: {}]
  %s3 = inlined_call_operand.hbm [shape: f32[2,1,1,128], index: 3, kind: output, shape index: {}]
  %s4 = sld [smem:[#allocation0]]
  $region49: #{tpu_custom_call.1} parent=0
    _
  %s6 = ssub.s32 1, %s4
  %s7 = scalar_select 0, %s6, %s4
  $region1: #{tpu_custom_call.1} parent=0
    #allocation2 [shape = 'u8[32768]{0}', space=vmem, size = 0x8000, scoped, tag = 'input window, operand 0']
    #allocation3 [shape = 's32[2]{0}', space=sflag, size = 0x8, scoped, tag = 'scoped memory for tpu_custom_call.1']
    #allocation4 [shape = 's32[2]{0}', space=sflag, size = 0x8, scoped, tag = 'scoped memory for tpu_custom_call.1']
    #allocation5 [shape = 'u8[1024]{0}', space=vmem, size = 0x400, scoped, tag = 'output window, operand 0']
    %8 = vsyncpa [#allocation3], 0
    %s9 = scalar_lea.sflag [#allocation3], 1
    %10 = vsyncpa %s9, 0
    %11 = vsyncpa [#allocation4], 0
    %s12 = scalar_lea.sflag [#allocation4], 1
    %13 = vsyncpa %s12, 0
    loop: start=0, step=1, limit=4
    $region2: #{tpu_custom_call.1} parent=1 // loop_pre_header
      _
    $region3: #{tpu_custom_call.1} parent=1 // loop_header
      %s15 = sphi 0, %s19
      %p16 = scmp.ge.s32.totalorder %s15, 4
      %s22 = sphi 0, %s34
      %s23 = sphi 0, %s30
      %s24 = sphi 0, %s22
      %s25 = sphi 0, %s23
      %s26 = sphi 0, %s24
      %s27 = sphi 0, %s25
      %s39 = sphi 0, %s41
      %s42 = sphi 0, %s39
      %s43 = sphi 0, %s42
      %s59 = sphi 0, %s43
      %s63 = sphi 0, %s63
      %s65 = sphi 0, %s63
      %s66 = sphi 0, %s65
      %s80 = sphi 0, %s66
      %s84 = sphi 0, %s84
      %s86 = sphi 0, %s84
      %s87 = sphi 0, %s86
      %s101 = sphi 0, %s87
      %s109 = sphi 0, %s111
      %s112 = sphi 0, %s109
      %s113 = sphi 0, %s112
      %s129 = sphi 0, %s113
    $region4: #{tpu_custom_call.1} parent=1 // loop_header_branch
      %18 = sbr.rel (%p16) target = $region8
    $region5: #{tpu_custom_call.1} parent=1 // loop_body
      %s20 = ssub.s32 %s15, 1
      %s21 = ssub.s32 %s15, 2
      %s28 = sadd.s32 1, %s23
      %p29 = scmp.ge.s32.totalorder %s28, 1
      %s30 = scalar_select %p29, 0, %s28
      %s31 = sadd.s32 1, %s22
      %s32 = scalar_select %p29, %s31, %s22
      %p33 = scmp.ge.s32.totalorder %s32, 2
      %s34 = scalar_select %p33, 0, %s32
      %s35 = ssub.s32 %s22, %s34
      %s36 = ssub.s32 %s23, %s30
      %s37 = sor.u32 %s35, %s36
      %p38 = scmp.eq.s32.totalorder %s37, 0
      %s40 = sadd.s32 %s39, 1
      %s41 = scalar_select %p38, %s39, %s40
      %p44 = pneg %p38
      %p45 = scmp.eq.s32.totalorder %s15, 1
      %p46 = por %p44, %p45
      %p47 = scmp.ne.s32.totalorder %s39, %s42
      %p48 = scmp.eq.s32.totalorder %s15, 0
      %p49 = por %p47, %p48
      %p50 = scmp.ne.s32.totalorder %s39, %s42
      %p51 = scmp.eq.s32.totalorder %s20, 1
      %p52 = por %p50, %p51
      %p53 = scmp.ne.s32.totalorder %s42, %s43
      %p54 = scmp.eq.s32.totalorder %s20, 0
      %p55 = por %p53, %p54
      %p56 = scmp.ne.s32.totalorder %s42, %s43
      %p57 = scmp.eq.s32.totalorder %s21, 1
      %p58 = por %p56, %p57
      %p60 = scmp.ne.s32.totalorder %s43, %s59
      %p61 = scmp.eq.s32.totalorder %s21, 0
      %p62 = por %p60, %p61
      %s64 = sadd.s32 %s63, 1
      %p67 = scmp.eq.s32.totalorder %s15, 1
      %p68 = scmp.ne.s32.totalorder %s63, %s65
      %p69 = scmp.eq.s32.totalorder %s15, 0
      %p70 = por %p68, %p69
      %p71 = scmp.ne.s32.totalorder %s63, %s65
      %p72 = scmp.eq.s32.totalorder %s20, 1
      %p73 = por %p71, %p72
      %p74 = scmp.ne.s32.totalorder %s65, %s66
      %p75 = scmp.eq.s32.totalorder %s20, 0
      %p76 = por %p74, %p75
      %p77 = scmp.ne.s32.totalorder %s65, %s66
      %p78 = scmp.eq.s32.totalorder %s21, 1
      %p79 = por %p77, %p78
      %p81 = scmp.ne.s32.totalorder %s66, %s80
      %p82 = scmp.eq.s32.totalorder %s21, 0
      %p83 = por %p81, %p82
      %s85 = sadd.s32 %s84, 1
      %p88 = scmp.eq.s32.totalorder %s15, 1
      %p89 = scmp.ne.s32.totalorder %s84, %s86
      %p90 = scmp.eq.s32.totalorder %s15, 0
      %p91 = por %p89, %p90
      %p92 = scmp.ne.s32.totalorder %s84, %s86
      %p93 = scmp.eq.s32.totalorder %s20, 1
      %p94 = por %p92, %p93
      %p95 = scmp.ne.s32.totalorder %s86, %s87
      %p96 = scmp.eq.s32.totalorder %s20, 0
      %p97 = por %p95, %p96
      %p98 = scmp.ne.s32.totalorder %s86, %s87
      %p99 = scmp.eq.s32.totalorder %s21, 1
      %p100 = por %p98, %p99
      %p102 = scmp.ne.s32.totalorder %s87, %s101
      %p103 = scmp.eq.s32.totalorder %s21, 0
      %p104 = por %p102, %p103
      %s105 = ssub.s32 %s22, %s34
      %s106 = ssub.s32 %s23, %s30
      %s107 = sor.u32 %s105, %s106
      %p108 = scmp.eq.s32.totalorder %s107, 0
      %s110 = sadd.s32 %s109, 1
      %s111 = scalar_select %p108, %s109, %s110
      %p114 = pneg %p108
      %p115 = scmp.eq.s32.totalorder %s15, 1
      %p116 = por %p114, %p115
      %p117 = scmp.ne.s32.totalorder %s109, %s112
      %p118 = scmp.eq.s32.totalorder %s15, 0
      %p119 = por %p117, %p118
      %p120 = scmp.ne.s32.totalorder %s109, %s112
      %p121 = scmp.eq.s32.totalorder %s20, 1
      %p122 = por %p120, %p121
      %p123 = scmp.ne.s32.totalorder %s112, %s113
      %p124 = scmp.eq.s32.totalorder %s20, 0
      %p125 = por %p123, %p124
      %p126 = scmp.ne.s32.totalorder %s112, %s113
      %p127 = scmp.eq.s32.totalorder %s21, 1
      %p128 = por %p126, %p127
      %p130 = scmp.ne.s32.totalorder %s113, %s129
      %p131 = scmp.eq.s32.totalorder %s21, 0
      %p132 = por %p130, %p131
      %p133 = scmp.le.s32.totalorder 1, %s15
      %p134 = scmp.lt.s32.totalorder %s15, 3
      %p135 = pnand %p133, %p134
      %p136 = pneg %p135
      // Predicated region
      $region9: #{tpu_custom_call.1} parent=5 // pred_check
        _
      $region10: #{tpu_custom_call.1} parent=5 // pred_check_branch
        %138 = sbr.rel (%p135) target = $region12
      $region11: #{tpu_custom_call.1} parent=5 // pred_region
        %s139 = ssub.s32 %s15, 1
        // Predicated region
        $region13: #{tpu_custom_call.1} parent=11 // pred_check
          %p140 = pneg %p76
        $region14: #{tpu_custom_call.1} parent=11 // pred_check_branch
          %142 = sbr.rel (%p140) target = $region16
        $region15: #{tpu_custom_call.1} parent=11 // pred_region
          _
        $region16: #{tpu_custom_call.1} parent=11 // pred_fallthru
          _
        // Predicated region
        $region17: #{tpu_custom_call.1} parent=11 // pred_check
          %p143 = pneg %p97
        $region18: #{tpu_custom_call.1} parent=11 // pred_check_branch
          %145 = sbr.rel (%p143) target = $region20
        $region19: #{tpu_custom_call.1} parent=11 // pred_region
          _
        $region20: #{tpu_custom_call.1} parent=11 // pred_fallthru
          _
      $region12: #{tpu_custom_call.1} parent=5 // pred_fallthru
        _
      %p146 = scmp.lt.s32.totalorder %s15, 2
      // Predicated region
      $region21: #{tpu_custom_call.1} parent=5 // pred_check
        %p147 = pneg %p146
      $region22: #{tpu_custom_call.1} parent=5 // pred_check_branch
        %149 = sbr.rel (%p147) target = $region24
      $region23: #{tpu_custom_call.1} parent=5 // pred_region
        // Predicated region
        $region25: #{tpu_custom_call.1} parent=23 // pred_check
          %p150 = pneg %p49
        $region26: #{tpu_custom_call.1} parent=23 // pred_check_branch
          %152 = sbr.rel (%p150) target = $region28
        $region27: #{tpu_custom_call.1} parent=23 // pred_region
          %s153 = sand.u32 %s39, 1
          %s154 = scalar_lea.sflag [#allocation3], %s153
          %s155 = sand.u32 %s39, 1
          %s156 = smul.addr %s155, 32
          %s157 = scalar_lea.vmem [#allocation2], %s156
          %s159 = ssub.s32 512, 512
          %160 = vsyncadd %s154, %s159
          %s161 = smul.addr %s22, 4
          %s162 = sadd.s32 %s23, %s161
          %s163 = smul.addr %s162, 128
          %s164 = scalar_lea.hbm %s0, %s163
          %s165 = sshll.u32 %s157, 4
          %s166 = int_to_ptr.vmem [resolvable:$true] %s165
          %171 = dma.hbm_to_vmem [thread:$0]  %s164, 512, %s166, %s154, 128, 128, 8
        $region28: #{tpu_custom_call.1} parent=23 // pred_fallthru
          _
      $region24: #{tpu_custom_call.1} parent=5 // pred_fallthru
        _
      %p172 = scmp.le.s32.totalorder 1, %s15
      %p173 = scmp.lt.s32.totalorder %s15, 3
      %p174 = pnand %p172, %p173
      %p175 = pneg %p174
      // Predicated region
      $region29: #{tpu_custom_call.1} parent=5 // pred_check
        _
      $region30: #{tpu_custom_call.1} parent=5 // pred_check_branch
        %177 = sbr.rel (%p174) target = $region32
      $region31: #{tpu_custom_call.1} parent=5 // pred_region
        %s178 = ssub.s32 %s15, 1
        %s179 = sand.u32 %s42, 1
        %s180 = scalar_lea.sflag [#allocation3], %s179
        %s181 = sand.u32 %s42, 1
        %s182 = smul.addr %s181, 32
        %s183 = scalar_lea.vmem [#allocation2], %s182
        // Predicated region
        $region33: #{tpu_custom_call.1} parent=31 // pred_check
          %p184 = pneg %p55
        $region34: #{tpu_custom_call.1} parent=31 // pred_check_branch
          %186 = sbr.rel (%p184) target = $region36
        $region35: #{tpu_custom_call.1} parent=31 // pred_region
          %187 = dma.done %s180, 512
        $region36: #{tpu_custom_call.1} parent=31 // pred_fallthru
          _
        %s188 = sand.u32 %s42, 1
        %s189 = scalar_lea.sflag [#allocation3], %s188
        %s190 = sand.u32 %s42, 1
        %s191 = smul.addr %s190, 32
        %s192 = scalar_lea.vmem [#allocation2], %s191
        %p193 = pneg %p55
        %p194 = pneg %p52
        %p195 = pneg %p76
        %p196 = pneg %p73
        %p197 = pneg %p97
        %p198 = pneg %p94
        %p199 = pneg %p125
        %p200 = pneg %p122
        %s201 = sand.u32 %s112, 1
        %s202 = scalar_lea.sflag [#allocation4], %s201
        %s203 = sand.u32 %s112, 1
        %s204 = scalar_lea.vmem [#allocation5], %s203
        %v206 = vld [vmem:[%s183] sm:$0xff]
        %v207 = vld [vmem:[%s183 + $0x8] sm:$0xff]
        %v208 = vpack.c.bf16 %v207, %v206
        %209 = vmatprep.subr.bf16.mxu0 0
        %210 = vmatpush1.bf16.xpose.msra.mxu0 %v208
        %211 = vmatprep.subr.bf16.mxu0 0
        %212 = vmatpush1.bf16.xpose.msra.mxu0 0
        %213 = vmatprep.subr.bf16.mxu0 0
        %214 = vmatpush1.bf16.xpose.msra.mxu0 0
        %215 = vmatprep.subr.bf16.mxu0 0
        %216 = vmatpush1.bf16.xpose.msra.mxu0 0
        %217 = vmatprep.subr.bf16.mxu0 0
        %218 = vmatpush1.bf16.xpose.msra.mxu0 0
        %219 = vmatprep.subr.bf16.mxu0 0
        %220 = vmatpush1.bf16.xpose.msra.mxu0 0
        %221 = vmatprep.subr.bf16.mxu0 0
        %222 = vmatpush1.bf16.xpose.msra.mxu0 0
        %223 = vmatprep.subr.bf16.mxu0 0
        %224 = vmatpush1.bf16.xpose.msra.mxu0 0
        %225 = vmatprep.subr.bf16.mxu0 0
        %226 = vmatpush1.bf16.xpose.msra.mxu0 0
        %227 = vmatprep.subr.bf16.mxu0 0
        %228 = vmatpush1.bf16.xpose.msra.mxu0 0
        %229 = vmatprep.subr.bf16.mxu0 0
        %230 = vmatpush1.bf16.xpose.msra.mxu0 0
        %231 = vmatprep.subr.bf16.mxu0 0
        %232 = vmatpush1.bf16.xpose.msra.mxu0 0
        %233 = vmatprep.subr.bf16.mxu0 0
        %234 = vmatpush1.bf16.xpose.msra.mxu0 0
        %235 = vmatprep.subr.bf16.mxu0 0
        %236 = vmatpush1.bf16.xpose.msra.mxu0 0
        %237 = vmatprep.subr.bf16.mxu0 0
        %238 = vmatpush1.bf16.xpose.msra.mxu0 0
        %239 = vmatprep.subr.bf16.mxu0 0
        %240 = vmatpush1.bf16.xpose.msra.mxu0 0
        %241 = vmatprep.mubr.bf16.mxu0 0
        %242 = vmatmul.mubr.bf16.gmra.mrb[0].mxu0 %v208
        %v243 = vpop.f32.mrb[0].mxu0
        %v244 = vadd.f32 0.0, %v243
        %v245 = vpop.f32.mrb[0].mxu0
        %v246 = vpop.f32.mrb[0].mxu0
        %v247 = vadd.f32 0.0, %v246
        %v248 = vpop.f32.mrb[0].mxu0
        %249 = vdwg.mxu0
        %v250 = vld [vmem:[%s1] sm:$0xff]
        %v251 = vld [vmem:[%s1 + $0x8] sm:$0xff]
        %v252 = vmul.f32 %v250, %v244
        %v253 = vmul.f32 %v251, %v247
        %vm254 = vcmask 130048
        %v255 = vsel %vm254, %v252, 0.0
        %v256 = vsel %vm254, %v253, 0.0
        %v257 = vadd.f32 %v255, %v256
        %258 = vadd.xlane.f32.xlu0 %v257
        %v259 = vpop.xlane.xlu0 %258
        %v260 = vrot.slane %v259, 4
        %v261 = vadd.f32 %v259, %v260
        %v262 = vrot.slane %v261, 2
        %v263 = vadd.f32 %v261, %v262
        %v264 = vrot.slane %v263, 1
        %v265 = vadd.f32 %v263, %v264
        %s266 = vtos %v265
        %v267 = vld [vmem:[%s2] sm:$0xff]
        %v268 = vld [vmem:[%s2 + $0x8] sm:$0xff]
        %270 = vset.pattern.permute.xlu0 0
        %271 = vperm.xlu0 %270, %v267
        %v272 = vpop.permute.xlu0 %271
        %275 = vset.pattern.permute.xlu0 0
        %276 = vperm.xlu0 %275, %v268
        %v277 = vpop.permute.xlu0 %276
        %v279 = vmul.f32 %v272, %v206
        %v280 = vmul.f32 %v277, %v207
        %v281 = vadd.f32 %v279, %v280
        %282 = vadd.xlane.f32.xlu0 %v281
        %v283 = vpop.xlane.xlu0 %282
        %v284 = vrot.slane %v283, 4
        %v285 = vadd.f32 %v283, %v284
        %v286 = vrot.slane %v285, 2
        %v287 = vadd.f32 %v285, %v286
        %v288 = vrot.slane %v287, 1
        %v289 = vadd.f32 %v287, %v288
        %s290 = vtos %v289
        %s291 = scalar_lea.vmem %s183, 16 [#allocation2]
        %v292 = vld [vmem:[%s291] sm:$0xff]
        %v293 = vld [vmem:[%s291 + $0x8] sm:$0xff]
        %v294 = vpack.c.bf16 %v293, %v292
        %295 = vmatprep.subr.bf16.mxu0 0
        %296 = vmatpush1.bf16.xpose.msra.mxu0 %v294
        %297 = vmatprep.subr.bf16.mxu0 0
        %298 = vmatpush1.bf16.xpose.msra.mxu0 0
        %299 = vmatprep.subr.bf16.mxu0 0
        %300 = vmatpush1.bf16.xpose.msra.mxu0 0
        %301 = vmatprep.subr.bf16.mxu0 0
        %302 = vmatpush1.bf16.xpose.msra.mxu0 0
        %303 = vmatprep.subr.bf16.mxu0 0
        %304 = vmatpush1.bf16.xpose.msra.mxu0 0
        %305 = vmatprep.subr.bf16.mxu0 0
        %306 = vmatpush1.bf16.xpose.msra.mxu0 0
        %307 = vmatprep.subr.bf16.mxu0 0
        %308 = vmatpush1.bf16.xpose.msra.mxu0 0
        %309 = vmatprep.subr.bf16.mxu0 0
        %310 = vmatpush1.bf16.xpose.msra.mxu0 0
        %311 = vmatprep.subr.bf16.mxu0 0
        %312 = vmatpush1.bf16.xpose.msra.mxu0 0
        %313 = vmatprep.subr.bf16.mxu0 0
        %314 = vmatpush1.bf16.xpose.msra.mxu0 0
        %315 = vmatprep.subr.bf16.mxu0 0
        %316 = vmatpush1.bf16.xpose.msra.mxu0 0
        %317 = vmatprep.subr.bf16.mxu0 0
        %318 = vmatpush1.bf16.xpose.msra.mxu0 0
        %319 = vmatprep.subr.bf16.mxu0 0
        %320 = vmatpush1.bf16.xpose.msra.mxu0 0
        %321 = vmatprep.subr.bf16.mxu0 0
        %322 = vmatpush1.bf16.xpose.msra.mxu0 0
        %323 = vmatprep.subr.bf16.mxu0 0
        %324 = vmatpush1.bf16.xpose.msra.mxu0 0
        %325 = vmatprep.subr.bf16.mxu0 0
        %326 = vmatpush1.bf16.xpose.msra.mxu0 0
        %327 = vmatprep.mubr.bf16.mxu0 0
        %328 = vmatmul.mubr.bf16.gmra.mrb[0].mxu0 %v294
        %v329 = vpop.f32.mrb[0].mxu0
        %v330 = vadd.f32 0.0, %v329
        %v331 = vpop.f32.mrb[0].mxu0
        %v332 = vpop.f32.mrb[0].mxu0
        %v333 = vadd.f32 0.0, %v332
        %v334 = vpop.f32.mrb[0].mxu0
        %335 = vdwg.mxu0
        %s336 = scalar_lea.vmem %s1, 16
        %v337 = vld [vmem:[%s336] sm:$0xff]
        %v338 = vld [vmem:[%s336 + $0x8] sm:$0xff]
        %v339 = vmul.f32 %v337, %v330
        %v340 = vmul.f32 %v338, %v333
        %v341 = vsel %vm254, %v339, 0.0
        %v342 = vsel %vm254, %v340, 0.0
        %v343 = vadd.f32 %v341, %v342
        %344 = vadd.xlane.f32.xlu0 %v343
        %v345 = vpop.xlane.xlu0 %344
        %v346 = vrot.slane %v345, 4
        %v347 = vadd.f32 %v345, %v346
        %v348 = vrot.slane %v347, 2
        %v349 = vadd.f32 %v347, %v348
        %v350 = vrot.slane %v349, 1
        %v351 = vadd.f32 %v349, %v350
        %s352 = vtos %v351
        %s353 = scalar_lea.vmem %s2, 16
        %v354 = vld [vmem:[%s353] sm:$0xff]
        %v355 = vld [vmem:[%s353 + $0x8] sm:$0xff]
        %357 = vset.pattern.permute.xlu0 0
        %358 = vperm.xlu0 %357, %v354
        %v359 = vpop.permute.xlu0 %358
        %362 = vset.pattern.permute.xlu0 0
        %363 = vperm.xlu0 %362, %v355
        %v364 = vpop.permute.xlu0 %363
        %v366 = vmul.f32 %v359, %v292
        %v367 = vmul.f32 %v364, %v293
        %v368 = vadd.f32 %v366, %v367
        %369 = vadd.xlane.f32.xlu0 %v368
        %v370 = vpop.xlane.xlu0 %369
        %v371 = vrot.slane %v370, 4
        %v372 = vadd.f32 %v370, %v371
        %v373 = vrot.slane %v372, 2
        %v374 = vadd.f32 %v372, %v373
        %v375 = vrot.slane %v374, 1
        %v376 = vadd.f32 %v374, %v375
        %s377 = vtos %v376
        %v378 = vstv %s290
        %v379 = vstv %s377
        %v380 = vstv %s266
        %v381 = vstv %s352
        %v382 = vlaneseq
        %vm383 = vcmp.ge.s32.totalorder %v382, 0
        %vm384 = vcmp.lt.s32.totalorder %v382, 1
        %vm385 = vmand %vm383, %vm384
        %v386 = vsel %vm385, %v378, %v379
        %vm387 = vcmp.lt.s32.totalorder %v382, 2
        %vm388 = vmand %vm383, %vm387
        %v389 = vsel %vm388, %v386, %v380
        %vm390 = vcmp.lt.s32.totalorder %v382, 3
        %vm391 = vmand %vm383, %vm390
        %v392 = vsel %vm391, %v389, %v381
        %vm393 = vcmp.lt.s32.totalorder %v382, 4
        %vm394 = vmand %vm383, %vm393
        %v395 = vsel %vm394, %v392, 0.0
        %396 = vst [vmem:[%s204] sm:$0x1] %v395
        %s397 = sand.u32 %s112, 1
        %s398 = scalar_lea.sflag [#allocation4], %s397
        %s399 = sand.u32 %s112, 1
        %s400 = scalar_lea.vmem [#allocation5], %s399
        // Predicated region
        $region37: #{tpu_custom_call.1} parent=31 // pred_check
          %p401 = pneg %p122
        $region38: #{tpu_custom_call.1} parent=31 // pred_check_branch
          %403 = sbr.rel (%p401) target = $region40
        $region39: #{tpu_custom_call.1} parent=31 // pred_region
          %s405 = ssub.s32 16, 16
          %406 = vsyncadd %s398, %s405
          %s407 = sadd.s32 %s25, %s24
          %s408 = smul.addr %s407, 16
          %s409 = scalar_lea.hbm %s3, %s408
          %s411 = sshll.u32 %s400, 4
          %s412 = int_to_ptr.vmem [resolvable:$true] %s411
          %414 = dma.vmem_to_hbm [thread:$0]  %s412, 16, %s409, %s398
        $region40: #{tpu_custom_call.1} parent=31 // pred_fallthru
          _
      $region32: #{tpu_custom_call.1} parent=5 // pred_fallthru
        _
      %p415 = scmp.le.s32.totalorder 2, %s15
      // Predicated region
      $region41: #{tpu_custom_call.1} parent=5 // pred_check
        %p416 = pneg %p415
      $region42: #{tpu_custom_call.1} parent=5 // pred_check_branch
        %418 = sbr.rel (%p416) target = $region44
      $region43: #{tpu_custom_call.1} parent=5 // pred_region
        %s419 = ssub.s32 %s15, 2
        // Predicated region
        $region45: #{tpu_custom_call.1} parent=43 // pred_check
          %p420 = pneg %p128
        $region46: #{tpu_custom_call.1} parent=43 // pred_check_branch
          %422 = sbr.rel (%p420) target = $region48
        $region47: #{tpu_custom_call.1} parent=43 // pred_region
          %s423 = sand.u32 %s113, 1
          %s424 = scalar_lea.sflag [#allocation4], %s423
          %s425 = sand.u32 %s113, 1
          %s426 = scalar_lea.vmem [#allocation5], %s425
          %427 = dma.done %s424, 16
        $region48: #{tpu_custom_call.1} parent=43 // pred_fallthru
          _
      $region44: #{tpu_custom_call.1} parent=5 // pred_fallthru
        _
    $region6: #{tpu_custom_call.1} parent=1 // loop_footer
      %s19 = sadd.s32 1, %s15
    $region7: #{tpu_custom_call.1} parent=1 // loop_footer_branch
      %14 = sbr.rel target = $region3
    $region8: #{tpu_custom_call.1} parent=1 // loop_exit
      _
    %428 = vsyncpa [#allocation3], 1
    %s429 = scalar_lea.sflag [#allocation3], 1
    %430 = vsyncpa %s429, 1
    %431 = vsyncpa [#allocation4], 1
    %s432 = scalar_lea.sflag [#allocation4], 1
    %433 = vsyncpa %s432, 1

</llo_original>
